<compile_context>
chip_gen: v5e
topology: v5e:2x2
jax: 0.10.0
libtpu: 0.0.40
codegen_flags: <defaults>
</compile_context>

<pallas_src>
import functools

import jax
import jax.numpy as jnp
from jax import lax
from jax.experimental import pallas as pl
from jax.experimental.pallas import tpu as pltpu


def _round_up(x, m):
    return ((x + m - 1) // m) * m


def _pick_tile(bs, d):
    """MXU/sublane-friendly square tile, capped by a VMEM budget and bs."""
    budget = 40 * 1024 * 1024  # headroom under v7x's 64 MiB VMEM
    tile = 8
    for t in (512, 256, 128, 64, 32, 16, 8):
        # 2 panels x 2 pipeline buffers x (t, D) f32  +  sim/neg (t, t) f32 x2
        vmem = 2 * 2 * t * d * 4 + 2 * t * t * 4
        if vmem <= budget:
            tile = t
            break
    # Never exceed the (sublane-rounded) batch; keep a multiple of 8.
    tile = min(tile, max(_round_up(bs, 8), 8))
    return tile


def _pair_tile_kernel(i_map_ref, j_map_ref, xr_ref, xc_ref, o_ref, *,
                      tile, bs, last_tile, ragged):
    """One (tile, tile) tile of -log(clip(sim)); writes its weighted partial sum."""
    p = pl.program_id(0)
    i_t = i_map_ref[p]
    j_t = j_map_ref[p]

    # Panels are already L2-normalized (done once in the wrapper).
    xr = xr_ref[...]  # (tile, D) f32
    xc = xc_ref[...]  # (tile, D) f32

    # (tile, tile) Gram tile: contract both operands on their last (lane)
    # axis -> MXU consumes A.A^T directly, no XLU transpose of the col panel.
    sim = lax.dot_general(
        xr, xc,
        dimension_numbers=(((1,), (1,)), ((), ())),
        preferred_element_type=jnp.float32,
    )
    sim = jnp.clip(sim, 0.0005, 0.9995)
    neg = -jnp.log(sim)

    is_diag = i_t == j_t
    # Symmetry weight: an off-diagonal tile pair stands in for its mirror.
    w = jnp.where(is_diag, jnp.float32(1.0), jnp.float32(2.0))

    if ragged:
        need_mask = is_diag | (i_t == last_tile) | (j_t == last_tile)
    else:
        need_mask = is_diag

    @pl.when(need_mask)
    def _():
        # Global-index mask: drop the diagonal and any zero-padded rows/cols.
        rows = lax.broadcasted_iota(jnp.int32, (tile, tile), 0) + i_t * tile
        cols = lax.broadcasted_iota(jnp.int32, (tile, tile), 1) + j_t * tile
        keep = (rows != cols) & (rows < bs) & (cols < bs)
        s = jnp.sum(jnp.where(keep, neg, 0.0))
        o_ref[...] = jnp.full((1, 8, 128), w * s, dtype=jnp.float32)

    @pl.when(jnp.logical_not(need_mask))
    def _():
        o_ref[...] = jnp.full((1, 8, 128), w * jnp.sum(neg), dtype=jnp.float32)


def shared_shared_loss(embedded_a, *, tile=None):
    """embedded_a: (bs, D). Returns the scalar f32 SharedSharedLoss.

    `tile` (optional) overrides the auto-picked square tile (must be a
    multiple of 8); useful for tests.
    """
    bs, d = embedded_a.shape
    if bs < 2:
        # PyTorch: mean over an empty off-diagonal selection -> NaN.
        return jnp.float32(jnp.nan)

    # --- F.normalize(embedded_a, dim=1), done once (bit-identical formula).
    x = embedded_a.astype(jnp.float32)
    norm = jnp.sqrt(jnp.sum(x * x, axis=1, keepdims=True))
    x_n = x / jnp.maximum(norm, 1e-12)

    # --- D-aware, ragged-safe tiling.
    if tile is None:
        tile = _pick_tile(bs, d)
    padded_bs = _round_up(bs, tile)
    if padded_bs != bs:
        x_n = jnp.pad(x_n, ((0, padded_bs - bs), (0, 0)))
    gt = padded_bs // tile
    ragged = padded_bs != bs

    # --- Upper-triangular tile-pair enumeration (Gram symmetry ~2x).
    pairs = [(i, j) for i in range(gt) for j in range(i, gt)]
    num_pairs = len(pairs)
    i_map = jnp.asarray([p[0] for p in pairs], dtype=jnp.int32)
    j_map = jnp.asarray([p[1] for p in pairs], dtype=jnp.int32)

    kernel = functools.partial(
        _pair_tile_kernel, tile=tile, bs=bs, last_tile=gt - 1, ragged=ragged)

    grid_spec = pltpu.PrefetchScalarGridSpec(
        num_scalar_prefetch=2,
        grid=(num_pairs,),
        in_specs=[
            pl.BlockSpec((tile, d), lambda p, im, jm: (im[p], 0)),  # row panel
            pl.BlockSpec((tile, d), lambda p, im, jm: (jm[p], 0)),  # col panel
        ],
        # Per-pair partial sums in a lane-dense (1, 8, 128) block: every grid
        # step owns a distinct output block, so the axis is "parallel"
        # (v7x dual-TC) and no serial scalar accumulator is needed.
        out_specs=pl.BlockSpec((1, 8, 128), lambda p, im, jm: (p, 0, 0)),
    )

    partials = pl.pallas_call(
        kernel,
        out_shape=jax.ShapeDtypeStruct((num_pairs, 8, 128), jnp.float32),
        grid_spec=grid_spec,
        compiler_params=pltpu.CompilerParams(
            dimension_semantics=("parallel",),
            vmem_limit_bytes=48 * 1024 * 1024,
        ),
        cost_estimate=pl.CostEstimate(
            flops=2 * num_pairs * tile * tile * d,
            transcendentals=num_pairs * tile * tile,
            bytes_accessed=num_pairs * (2 * tile * d + 8 * 128) * 4,
        ),
    )(i_map, j_map, x_n, x_n)

    # Final reduction + mean over the bs*(bs-1) off-diagonal elements.
    return jnp.sum(partials[:, 0, 0]) / jnp.float32(bs * (bs - 1))


def _reference(embedded_a):
    x = embedded_a.astype(jnp.float32)
    norm = jnp.sqrt(jnp.sum(x * x, axis=1, keepdims=True))
    xn = x / jnp.maximum(norm, 1e-12)
    sim = jnp.clip(xn @ xn.T, 0.0005, 0.9995)
    bs = x.shape[0]
    mask = ~jnp.eye(bs, dtype=bool)
    return jnp.mean(-jnp.log(sim[mask]))


if __name__ == "__main__":
    key = jax.random.PRNGKey(0)

    # Case 1: small canonical shape (single diagonal tile).
    bs, d = 8, 32
    a1 = jax.random.normal(key, (bs, d), dtype=jnp.float32)
    l1 = shared_shared_loss(a1)
    jax.block_until_ready(l1)
    r1 = _reference(a1)
    assert jnp.allclose(l1, r1, rtol=1e-5, atol=1e-5), (l1, r1)

    # Case 2: multi-tile upper-triangular path (symmetry weights, prefetch maps).
    a2 = jax.random.normal(jax.random.PRNGKey(1), (24, 32), dtype=jnp.float32)
    l2 = shared_shared_loss(a2, tile=8)
    jax.block_until_ready(l2)
    r2 = _reference(a2)
    assert jnp.allclose(l2, r2, rtol=1e-5, atol=1e-5), (l2, r2)

    # Case 3: ragged bs (padding + global-index masking on edge tiles).
    a3 = jax.random.normal(jax.random.PRNGKey(2), (20, 32), dtype=jnp.float32)
    l3 = shared_shared_loss(a3, tile=8)
    jax.block_until_ready(l3)
    r3 = _reference(a3)
    assert jnp.allclose(l3, r3, rtol=1e-5, atol=1e-5), (l3, r3)

    print("KERNEL_OK")
</pallas_src>

<mosaic_0001>
module attributes {stable_mosaic.version = 11 : i64} {
  func.func @_pair_tile_kernel(%arg0: i32, %arg1: memref<1xi32, #tpu.memory_space<smem>>, %arg2: memref<1xi32, #tpu.memory_space<smem>>, %arg3: memref<8x32xf32, #tpu.memory_space<vmem>>, %arg4: memref<8x32xf32, #tpu.memory_space<vmem>>, %arg5: memref<1x8x128xf32, #tpu.memory_space<vmem>>) attributes {dimension_semantics = [#tpu.dimension_semantics<parallel>], iteration_bounds = array<i64: 1>, scalar_prefetch = 2 : i64, scratch_operands = 0 : i64, tpu.core_type = #tpu.core_type<tc>, window_params = [{transform_indices = @transform_0, window_bounds = array<i64: 8, 32>}, {transform_indices = @transform_1, window_bounds = array<i64: 8, 32>}, {transform_indices = @transform_2, window_bounds = array<i64: 1, 8, 128>}]} {
    %0 = arith.index_cast %arg0 : i32 to index
    %1 = memref.load %arg1[%0] : memref<1xi32, #tpu.memory_space<smem>>
    %2 = arith.index_cast %arg0 : i32 to index
    %3 = memref.load %arg2[%2] : memref<1xi32, #tpu.memory_space<smem>>
    %c0 = arith.constant 0 : index
    %c0_0 = arith.constant 0 : index
    %4 = vector.load %arg3[%c0, %c0_0] : memref<8x32xf32, #tpu.memory_space<vmem>>, vector<8x32xf32>
    %c0_1 = arith.constant 0 : index
    %c0_2 = arith.constant 0 : index
    %5 = vector.load %arg4[%c0_1, %c0_2] : memref<8x32xf32, #tpu.memory_space<vmem>>, vector<8x32xf32>
    %cst = arith.constant dense<0.000000e+00> : vector<8x8xf32>
    %6 = tpu.matmul %4, %5, %cst {dimension_numbers = #tpu.dot_dimension_numbers<[1], [1], [0], [0], [0, 0, 1, 0], [], []>} : vector<8x32xf32>, vector<8x32xf32>, vector<8x8xf32> -> vector<8x8xf32>
    %cst_3 = arith.constant 5.000000e-04 : f32
    %cst_4 = arith.constant 0.999499976 : f32
    %7 = vector.broadcast %cst_3 : f32 to vector<8x8xf32>
    %8 = arith.maximumf %7, %6 : vector<8x8xf32>
    %9 = vector.broadcast %cst_4 : f32 to vector<8x8xf32>
    %10 = arith.minimumf %9, %8 : vector<8x8xf32>
    %11 = math.log %10 : vector<8x8xf32>
    %cst_5 = arith.constant 0.000000e+00 : f32
    %12 = vector.broadcast %cst_5 : f32 to vector<8x8xf32>
    %13 = arith.subf %12, %11 : vector<8x8xf32>
    %14 = arith.cmpi eq, %1, %3 : i32
    %cst_6 = arith.constant 1.000000e+00 : f32
    %cst_7 = arith.constant 2.000000e+00 : f32
    %15 = arith.select %14, %cst_6, %cst_7 : f32
    %16 = arith.extui %14 : i1 to i32
    %c0_i32 = arith.constant 0 : i32
    %17 = arith.cmpi ne, %16, %c0_i32 : i32
    scf.if %17 {
      %21 = tpu.iota {dimensions = array<i32: 0>} : vector<8x8xi32>
      %c8_i32 = arith.constant 8 : i32
      %22 = arith.muli %1, %c8_i32 : i32
      %23 = vector.broadcast %22 : i32 to vector<8x8xi32>
      %24 = arith.addi %21, %23 : vector<8x8xi32>
      %25 = tpu.iota {dimensions = array<i32: 1>} : vector<8x8xi32>
      %c8_i32_9 = arith.constant 8 : i32
      %26 = arith.muli %3, %c8_i32_9 : i32
      %27 = vector.broadcast %26 : i32 to vector<8x8xi32>
      %28 = arith.addi %25, %27 : vector<8x8xi32>
      %29 = arith.cmpi ne, %24, %28 : vector<8x8xi32>
      %c8_i32_10 = arith.constant 8 : i32
      %30 = vector.broadcast %c8_i32_10 : i32 to vector<8x8xi32>
      %31 = arith.cmpi slt, %24, %30 : vector<8x8xi32>
      %32 = arith.andi %29, %31 : vector<8x8xi1>
      %c8_i32_11 = arith.constant 8 : i32
      %33 = vector.broadcast %c8_i32_11 : i32 to vector<8x8xi32>
      %34 = arith.cmpi slt, %28, %33 : vector<8x8xi32>
      %35 = arith.andi %32, %34 : vector<8x8xi1>
      %cst_12 = arith.constant 0.000000e+00 : f32
      %36 = vector.broadcast %cst_12 : f32 to vector<8x8xf32>
      %37 = arith.select %35, %13, %36 : vector<8x8xi1>, vector<8x8xf32>
      %38 = vector.shape_cast %37 : vector<8x8xf32> to vector<1x8x8xf32>
      %cst_13 = arith.constant dense<0.000000e+00> : vector<1xf32>
      %39 = vector.multi_reduction <add>, %38, %cst_13 [1, 2] : vector<1x8x8xf32> to vector<1xf32>
      %40 = vector.shape_cast %39 : vector<1xf32> to vector<1x1x1xf32>
      %41 = vector.extract %40[0, 0, 0] : f32 from vector<1x1x1xf32>
      %42 = arith.mulf %15, %41 : f32
      %43 = vector.broadcast %42 : f32 to vector<1x8x128xf32>
      %c0_14 = arith.constant 0 : index
      %c0_15 = arith.constant 0 : index
      %c0_16 = arith.constant 0 : index
      %44 = vector.load %arg5[%c0_14, %c0_15, %c0_16] : memref<1x8x128xf32, #tpu.memory_space<vmem>>, vector<1x8x128xf32>
      tpu.vector_store %arg5[%c0_14, %c0_15, %c0_16], %43 {strides = array<i32>} : memref<1x8x128xf32, #tpu.memory_space<vmem>>, vector<1x8x128xf32>,
    } else {
    }
    %true = arith.constant true
    %18 = arith.xori %14, %true : i1
    %19 = arith.extui %18 : i1 to i32
    %c0_i32_8 = arith.constant 0 : i32
    %20 = arith.cmpi ne, %19, %c0_i32_8 : i32
    scf.if %20 {
      %21 = vector.shape_cast %13 : vector<8x8xf32> to vector<1x8x8xf32>
      %cst_9 = arith.constant dense<0.000000e+00> : vector<1xf32>
      %22 = vector.multi_reduction <add>, %21, %cst_9 [1, 2] : vector<1x8x8xf32> to vector<1xf32>
      %23 = vector.shape_cast %22 : vector<1xf32> to vector<1x1x1xf32>
      %24 = vector.extract %23[0, 0, 0] : f32 from vector<1x1x1xf32>
      %25 = arith.mulf %15, %24 : f32
      %26 = vector.broadcast %25 : f32 to vector<1x8x128xf32>
      %c0_10 = arith.constant 0 : index
      %c0_11 = arith.constant 0 : index
      %c0_12 = arith.constant 0 : index
      %27 = vector.load %arg5[%c0_10, %c0_11, %c0_12] : memref<1x8x128xf32, #tpu.memory_space<vmem>>, vector<1x8x128xf32>
      tpu.vector_store %arg5[%c0_10, %c0_11, %c0_12], %26 {strides = array<i32>} : memref<1x8x128xf32, #tpu.memory_space<vmem>>, vector<1x8x128xf32>,
    } else {
    }
    return
  }
  func.func @transform_0(%arg0: i32, %arg1: memref<1xi32, #tpu.memory_space<smem>>, %arg2: memref<1xi32, #tpu.memory_space<smem>>) -> (i32, i32) {
    %0 = arith.index_cast %arg0 : i32 to index
    %1 = memref.load %arg1[%0] : memref<1xi32, #tpu.memory_space<smem>>
    %c0_i32 = arith.constant 0 : i32
    %c0_i32_0 = arith.constant 0 : i32
    return %1, %c0_i32 : i32, i32
  }
  func.func @transform_1(%arg0: i32, %arg1: memref<1xi32, #tpu.memory_space<smem>>, %arg2: memref<1xi32, #tpu.memory_space<smem>>) -> (i32, i32) {
    %0 = arith.index_cast %arg0 : i32 to index
    %1 = memref.load %arg2[%0] : memref<1xi32, #tpu.memory_space<smem>>
    %c0_i32 = arith.constant 0 : i32
    %c0_i32_0 = arith.constant 0 : i32
    return %1, %c0_i32 : i32, i32
  }
  func.func @transform_2(%arg0: i32, %arg1: memref<1xi32, #tpu.memory_space<smem>>, %arg2: memref<1xi32, #tpu.memory_space<smem>>) -> (i32, i32, i32) {
    %c0_i32 = arith.constant 0 : i32
    %c0_i32_0 = arith.constant 0 : i32
    %c0_i32_1 = arith.constant 0 : i32
    return %arg0, %c0_i32, %c0_i32_0 : i32, i32, i32
  }
}

</mosaic_0001>

<llo_original>
// kernel: tpu_custom_call.1
$region0: #{tpu_custom_call.1}
  #allocation0 [shape = 'u32[]', space=smem, size = 0x4, offset = 0x4, fixed_abs, tag = 'smem constant byte address 0x4 - core index']
  #allocation1 [shape = 'u32[72,128]{1,0:T(1,128)}', space=vmem, size = 0x9000, scoped, tag = 'internal scratch']
  #allocation2 [shape = 's32[1]{0}', space=sflag, size = 0x4, scoped, tag = 'scoped memory for tpu_custom_call.1']
  #allocation3 [shape = 's32[1]{0:T(128)S(6)}', space=smem, size = 0x200, scoped, tag = 'prefetched SMEM operand 0']
  #allocation4 [shape = 's32[1]{0:T(128)S(6)}', space=smem, size = 0x200, scoped, tag = 'prefetched SMEM operand 1']
  %s0 = inlined_call_operand.<no memory space> [shape: s32[1], index: 0, kind: input, shape index: {}]
  %s1 = inlined_call_operand.<no memory space> [shape: s32[1], index: 1, kind: input, shape index: {}]
  %s2 = inlined_call_operand.hbm [shape: f32[8,32], index: 2, kind: input, shape index: {}]
  %s3 = inlined_call_operand.hbm [shape: f32[8,32], index: 3, kind: input, shape index: {}]
  %s4 = inlined_call_operand.hbm [shape: f32[1,8,128], index: 4, kind: output, shape index: {}]
  %s5 = sld [smem:[#allocation0]]
  $region34: #{tpu_custom_call.1} parent=0
    _
  %s7 = ssub.s32 1, %s5
  %s8 = scalar_select 0, %s7, %s5
  %9 = sst [smem:[#allocation3]] %s0
  %10 = sst [smem:[#allocation4]] %s1
  $region1: #{tpu_custom_call.1} parent=0
    #allocation5 [shape = 'u8[4096]{0}', space=vmem, size = 0x1000, scoped, tag = 'input window, operand 2, single buffered']
    #allocation6 [shape = 's32[1]{0}', space=sflag, size = 0x4, scoped, tag = 'scoped memory for tpu_custom_call.1']
    #allocation7 [shape = 's32[1]{0}', space=sflag, size = 0x4, scoped, tag = 'scoped memory for tpu_custom_call.1']
    #allocation8 [shape = 'u8[4096]{0}', space=vmem, size = 0x1000, scoped, tag = 'input window, operand 3, single buffered']
    #allocation9 [shape = 's32[1]{0}', space=sflag, size = 0x4, scoped, tag = 'scoped memory for tpu_custom_call.1']
    #allocation10 [shape = 'u8[4096]{0}', space=vmem, size = 0x1000, scoped, tag = 'output window, operand 0, single buffered']
    %11 = vsyncpa [#allocation6], 0
    %12 = vsyncpa [#allocation9], 0
    %13 = vsyncpa [#allocation7], 0
    // Predicated region
    $region2: #{tpu_custom_call.1} parent=1 // pred_check
      _
    $region3: #{tpu_custom_call.1} parent=1 // pred_check_branch
      %15 = sbr.rel (0) target = $region5
    $region4: #{tpu_custom_call.1} parent=1 // pred_region
      %s16 = sld [smem:[#allocation3]]
      %18 = vsyncadd [#allocation6], 0
      %s19 = smul.addr %s16, 8
      %s20 = scalar_lea.hbm %s2, %s19
      %s22 = sshll.u32 %s20, 4
      %s23 = int_to_ptr.hbm [resolvable:$true] %s22
      %s24 = sshll.u32 [#allocation5], 4
      %s25 = int_to_ptr.vmem [resolvable:$true] %s24
      %27 = dma.hbm_to_vmem [thread:$0]  %s23, 128, %s25, [#allocation6]
    $region5: #{tpu_custom_call.1} parent=1 // pred_fallthru
      _
    // Predicated region
    $region6: #{tpu_custom_call.1} parent=1 // pred_check
      _
    $region7: #{tpu_custom_call.1} parent=1 // pred_check_branch
      %29 = sbr.rel (0) target = $region9
    $region8: #{tpu_custom_call.1} parent=1 // pred_region
      %s30 = sld [smem:[#allocation4]]
      %32 = vsyncadd [#allocation9], 0
      %s33 = smul.addr %s30, 8
      %s34 = scalar_lea.hbm %s3, %s33
      %s36 = sshll.u32 %s34, 4
      %s37 = int_to_ptr.hbm [resolvable:$true] %s36
      %s38 = sshll.u32 [#allocation8], 4
      %s39 = int_to_ptr.vmem [resolvable:$true] %s38
      %41 = dma.hbm_to_vmem [thread:$0]  %s37, 128, %s39, [#allocation9]
    $region9: #{tpu_custom_call.1} parent=1 // pred_fallthru
      _
    // Predicated region
    $region10: #{tpu_custom_call.1} parent=1 // pred_check
      _
    $region11: #{tpu_custom_call.1} parent=1 // pred_check_branch
      %43 = sbr.rel (0) target = $region13
    $region12: #{tpu_custom_call.1} parent=1 // pred_region
      %45 = dma.done [#allocation6], 128
    $region13: #{tpu_custom_call.1} parent=1 // pred_fallthru
      _
    // Predicated region
    $region14: #{tpu_custom_call.1} parent=1 // pred_check
      _
    $region15: #{tpu_custom_call.1} parent=1 // pred_check_branch
      %47 = sbr.rel (0) target = $region17
    $region16: #{tpu_custom_call.1} parent=1 // pred_region
      %49 = dma.done [#allocation9], 128
    $region17: #{tpu_custom_call.1} parent=1 // pred_fallthru
      _
    %s50 = sld [smem:[#allocation3]]
    %s51 = sld [smem:[#allocation4]]
    %s52 = sld [smem:[#allocation3]]
    %s53 = sld [smem:[#allocation4]]
    %v54 = vld [vmem:[#allocation5] sm:$0xff]
    %v55 = vld [vmem:[#allocation8] sm:$0xff]
    %vm56 = vcmask 261120
    %v58 = vsel %vm56, %v54, 0
    %v61 = vsel %vm56, %v55, 0
    %63 = vmatpush.xpose.msra.mxu0 0.0
    %64 = vmatpush.xpose.msra.mxu0 0.0
    %65 = vmatpush.xpose.msra.mxu0 0.0
    %66 = vmatpush.xpose.msra.mxu0 0.0
    %67 = vmatpush.xpose.msra.mxu0 0.0
    %68 = vmatpush.xpose.msra.mxu0 0.0
    %69 = vmatpush.xpose.msra.mxu0 0.0
    %70 = vmatpush.xpose.msra.mxu0 0.0
    %71 = vmatpush.xpose.msra.mxu0 0.0
    %72 = vmatpush.xpose.msra.mxu0 0.0
    %73 = vmatpush.xpose.msra.mxu0 0.0
    %74 = vmatpush.xpose.msra.mxu0 0.0
    %75 = vmatpush.xpose.msra.mxu0 0.0
    %76 = vmatpush.xpose.msra.mxu0 0.0
    %77 = vmatpush.xpose.msra.mxu0 0.0
    %78 = vmatpush.xpose.msra.mxu0 %v61
    %79 = vmatmul.f32.gmra.mxu0 %v58
    %v80 = vpop.f32.mrf.mxu0
    %v81 = vadd.f32 0.0, %v80
    %82 = vdwg.mxu0
    %v83 = vmax.f32 %v81, 0.0005
    %v84 = vmin.f32 %v83, 0.9995
    %v85 = vlog2.pop %v84
    %v86 = vmul.f32 %v85, 0.6931472
    %v87 = vsub.f32 0.0, %v86
    %p88 = scmp.eq.s32.totalorder %s52, %s53
    %s89 = scalar_select %p88, 1.0, 2.0
    // Predicated region
    $region18: #{tpu_custom_call.1} parent=1 // pred_check
      %p90 = pneg %p88
    $region19: #{tpu_custom_call.1} parent=1 // pred_check_branch
      %92 = sbr.rel (%p90) target = $region21
    $region20: #{tpu_custom_call.1} parent=1 // pred_region
      %v93 = vlaneseq
      %v94 = vshrl.u32 %v93, 7
      %s95 = smul.u32 %s52, 8
      %v96 = vstv %s95
      %v97 = vadd.s32 %v94, %v96
      %v98 = vlaneseq
      %v99 = vand.u32 %v98, 127
      %s100 = smul.u32 %s53, 8
      %v101 = vstv %s100
      %v102 = vadd.s32 %v99, %v101
      %vm103 = vcmp.ne.s32.totalorder %v97, %v102
      %vm104 = vcmp.lt.s32.totalorder %v97, 8
      %vm105 = vmand %vm103, %vm104
      %vm106 = vcmp.lt.s32.totalorder %v102, 8
      %vm107 = vmand %vm105, %vm106
      %v108 = vsel %vm107, %v87, 0.0
      %vm109 = vcmask 64512
      %v110 = vsel %vm109, %v108, 0.0
      %111 = vadd.xlane.f32.xlu0 %v110
      %v112 = vpop.xlane.xlu0 %111
      %v113 = vrot.slane %v112, 4
      %v114 = vadd.f32 %v112, %v113
      %v115 = vrot.slane %v114, 2
      %v116 = vadd.f32 %v114, %v115
      %v117 = vrot.slane %v116, 1
      %v118 = vadd.f32 %v116, %v117
      %s119 = vtos %v118
      %s120 = smul.f32 %s89, %s119
      %v121 = vstv %s120
      %122 = vst [vmem:[#allocation10] sm:$0xff] %v121
    $region21: #{tpu_custom_call.1} parent=1 // pred_fallthru
      _
    %p123 = scmp.ne.s32.totalorder %s52, %s53
    // Predicated region
    $region22: #{tpu_custom_call.1} parent=1 // pred_check
      %p124 = pneg %p123
    $region23: #{tpu_custom_call.1} parent=1 // pred_check_branch
      %126 = sbr.rel (%p124) target = $region25
    $region24: #{tpu_custom_call.1} parent=1 // pred_region
      %vm127 = vcmask 64512
      %v128 = vsel %vm127, %v87, 0.0
      %129 = vadd.xlane.f32.xlu0 %v128
      %v130 = vpop.xlane.xlu0 %129
      %v131 = vrot.slane %v130, 4
      %v132 = vadd.f32 %v130, %v131
      %v133 = vrot.slane %v132, 2
      %v134 = vadd.f32 %v132, %v133
      %v135 = vrot.slane %v134, 1
      %v136 = vadd.f32 %v134, %v135
      %s137 = vtos %v136
      %s138 = smul.f32 %s89, %s137
      %v139 = vstv %s138
      %140 = vst [vmem:[#allocation10] sm:$0xff] %v139
    $region25: #{tpu_custom_call.1} parent=1 // pred_fallthru
      _
    // Predicated region
    $region26: #{tpu_custom_call.1} parent=1 // pred_check
      _
    $region27: #{tpu_custom_call.1} parent=1 // pred_check_branch
      %142 = sbr.rel (0) target = $region29
    $region28: #{tpu_custom_call.1} parent=1 // pred_region
      %144 = vsyncadd [#allocation7], 0
      %s146 = sshll.u32 [#allocation10], 4
      %s147 = int_to_ptr.vmem [resolvable:$true] %s146
      %s148 = sshll.u32 %s4, 4
      %s149 = int_to_ptr.hbm [resolvable:$true] %s148
      %151 = dma.vmem_to_hbm [thread:$0]  %s147, 128, %s149, [#allocation7]
    $region29: #{tpu_custom_call.1} parent=1 // pred_fallthru
      _
    // Predicated region
    $region30: #{tpu_custom_call.1} parent=1 // pred_check
      _
    $region31: #{tpu_custom_call.1} parent=1 // pred_check_branch
      %153 = sbr.rel (0) target = $region33
    $region32: #{tpu_custom_call.1} parent=1 // pred_region
      %155 = dma.done [#allocation7], 128
    $region33: #{tpu_custom_call.1} parent=1 // pred_fallthru
      _
    %156 = vsyncpa [#allocation6], 1
    %157 = vsyncpa [#allocation9], 1
    %158 = vsyncpa [#allocation7], 1

</llo_original>
